<compile_context>
chip_gen: v5e
topology: v5e:2x2
jax: 0.10.0
libtpu: 0.0.40
codegen_flags: <defaults>
</compile_context>

<pallas_src>
import jax
import jax.numpy as jnp
from jax.experimental import pallas as pl
from jax.experimental.pallas import tpu as pltpu

NUM_OPERATIONS = 16
LANES = 128
TILE_R = 8192                      # rows/step: (8192,128) f32 = 4 MiB per operand
_VMEM_LIMIT_BYTES = 32 << 20       # 3 operands x 2 bufs x 4 MiB = 24 MiB + slack
_PALLAS_MIN_BATCH = 1 << 16        # below this, skip pallas_call entirely

# Coefficients of each gate k as an affine function  w0*1 + w1*a + w2*b + w3*ab
# (same gate order as the PyTorch _compute_continuous_operations stack).
_OP_AFFINE_COEFFS = (
    (0.0,  0.0,  0.0,  0.0),   # 0: FALSE
    (0.0,  0.0,  0.0,  1.0),   # 1: a AND b
    (0.0,  1.0,  0.0, -1.0),   # 2: a AND NOT b
    (0.0,  1.0,  0.0,  0.0),   # 3: a
    (0.0,  0.0,  1.0, -1.0),   # 4: NOT a AND b
    (0.0,  0.0,  1.0,  0.0),   # 5: b
    (0.0,  1.0,  1.0, -2.0),   # 6: a XOR b
    (0.0,  1.0,  1.0, -1.0),   # 7: a OR b
    (1.0, -1.0, -1.0,  1.0),   # 8: NOR
    (1.0, -1.0, -1.0,  2.0),   # 9: XNOR
    (1.0,  0.0, -1.0,  0.0),   # 10: NOT b
    (1.0,  0.0, -1.0,  1.0),   # 11: a OR NOT b
    (1.0, -1.0,  0.0,  0.0),   # 12: NOT a
    (1.0, -1.0,  0.0,  1.0),   # 13: NOT a OR b
    (1.0,  0.0,  0.0, -1.0),   # 14: NAND
    (1.0,  0.0,  0.0,  0.0),   # 15: TRUE
)


def _logic_gate_kernel(c_ref, a_ref, b_ref, o_ref):
    """c_ref: (4,) f32 in SMEM. a/b: (tile_r, 128) native-dtype VMEM tiles."""
    a = jnp.clip(a_ref[...].astype(jnp.float32), 0.0, 1.0)
    b = jnp.clip(b_ref[...].astype(jnp.float32), 0.0, 1.0)
    out = c_ref[0] + c_ref[1] * a + c_ref[2] * b + c_ref[3] * (a * b)
    o_ref[...] = out.astype(o_ref.dtype)


def _affine_eval(a, b, coeffs, out_dtype):
    """Plain-JAX evaluation of the collapsed gate (fast path + ragged tail)."""
    a = jnp.clip(a.astype(jnp.float32), 0.0, 1.0)
    b = jnp.clip(b.astype(jnp.float32), 0.0, 1.0)
    out = coeffs[0] + coeffs[1] * a + coeffs[2] * b + coeffs[3] * (a * b)
    return out.astype(out_dtype)


def diff_logic_gate_forward(a, b, gate_logits, temperature=1.0, *,
                            out_dtype=None,
                            min_pallas_batch=_PALLAS_MIN_BATCH):
    """Pallas implementation of DifferentiableLogicGate.forward.

    a, b: (batch,) arrays (float32 / bfloat16 / float16 — streamed in native
          dtype, upcast in-register).
    gate_logits: (16,) float32
    returns: (batch,) array; dtype matches torch promotion (f32 by default).
    """
    assert a.shape == b.shape and a.ndim == 1
    batch = a.shape[0]

    in_dtype = jnp.promote_types(a.dtype, b.dtype)
    if out_dtype is None:
        # torch: float32 gate_probs * input -> float32 output.
        out_dtype = jnp.promote_types(in_dtype, jnp.float32)
    a = a.astype(in_dtype)
    b = b.astype(in_dtype)

    # Tiny glue in plain JAX: softmax + collapse the 16-gate mixture to the
    # 4 affine coefficients of {1, a, b, a*b}.
    gate_probs = jax.nn.softmax(
        gate_logits.astype(jnp.float32) / temperature, axis=0)
    coeff_matrix = jnp.asarray(_OP_AFFINE_COEFFS, dtype=jnp.float32)  # (16, 4)
    coeffs = coeff_matrix.T @ gate_probs                              # (4,)

    # Small-batch fast path: pallas_call launch + pipeline prologue dominates.
    if batch < max(min_pallas_batch, LANES):
        return _affine_eval(a, b, coeffs, out_dtype)

    # 128-aligned prefix goes through Pallas as a lane-dense (rows, 128) slab;
    # the <=127-element ragged tail is handled in plain JAX (no full-array
    # pad / slice passes over HBM).
    aligned = (batch // LANES) * LANES
    rows = aligned // LANES
    a2 = a[:aligned].reshape(rows, LANES)
    b2 = b[:aligned].reshape(rows, LANES)

    # Row tile: as large as possible (amortize per-step overhead) but never a
    # single grid step, so v7x's two TensorCores both get work.  Partial
    # trailing tiles are masked by Pallas automatically.
    half_rows_8 = ((pl.cdiv(rows, 2) + 7) // 8) * 8
    tile_r = min(TILE_R, half_rows_8)
    if tile_r >= rows:
        tile_r = rows
    grid = (pl.cdiv(rows, tile_r),)

    out2 = pl.pallas_call(
        _logic_gate_kernel,
        out_shape=jax.ShapeDtypeStruct((rows, LANES), out_dtype),
        grid=grid,
        in_specs=[
            pl.BlockSpec(memory_space=pltpu.MemorySpace.SMEM),       # coeffs
            pl.BlockSpec((tile_r, LANES), lambda i: (i, 0)),         # a
            pl.BlockSpec((tile_r, LANES), lambda i: (i, 0)),         # b
        ],
        out_specs=pl.BlockSpec((tile_r, LANES), lambda i: (i, 0)),
        compiler_params=pltpu.CompilerParams(
            dimension_semantics=("parallel",),
            vmem_limit_bytes=_VMEM_LIMIT_BYTES),
    )(coeffs, a2, b2)

    out = out2.reshape(aligned)
    if aligned == batch:
        return out
    tail = _affine_eval(a[aligned:], b[aligned:], coeffs, out_dtype)
    return jnp.concatenate([out, tail], axis=0)


def _reference_forward(a, b, gate_logits, temperature=1.0):
    """Pure-JAX reference mirroring the PyTorch module exactly (f32)."""
    gate_probs = jax.nn.softmax(gate_logits / temperature, axis=0)
    a = jnp.clip(a.astype(jnp.float32), 0.0, 1.0)
    b = jnp.clip(b.astype(jnp.float32), 0.0, 1.0)
    ab = a * b
    ops = jnp.stack(
        [jnp.zeros_like(a), ab, a - ab, a, b - ab, b, a + b - 2 * ab,
         a + b - ab, 1 - (a + b - ab), 1 - (a + b - 2 * ab), 1 - b,
         1 - b + ab, 1 - a, 1 - a + ab, 1 - ab, jnp.ones_like(a)], axis=1)
    return jnp.sum(gate_probs[None, :] * ops, axis=1)


if __name__ == "__main__":
    key = jax.random.PRNGKey(0)
    ka, kb = jax.random.split(key)

    # Deterministic parameter init matching the module's __init__:
    # zeros(16) with logits[3] = logits[5] = 2.0.
    gate_logits = jnp.zeros((NUM_OPERATIONS,), jnp.float32)
    gate_logits = gate_logits.at[3].set(2.0).at[5].set(2.0)
    temperature = 1.0

    # Lane-aligned batch; min_pallas_batch=0 forces the Pallas path (grid >= 2).
    batch = 4096
    a = jax.random.uniform(ka, (batch,), jnp.float32, -0.25, 1.25)
    b = jax.random.uniform(kb, (batch,), jnp.float32, -0.25, 1.25)
    out = jax.block_until_ready(
        diff_logic_gate_forward(a, b, gate_logits, temperature,
                                min_pallas_batch=0))
    ref = _reference_forward(a, b, gate_logits, temperature)
    assert out.shape == (batch,) and out.dtype == jnp.float32
    assert jnp.allclose(out, ref, atol=1e-5, rtol=1e-5)

    # Ragged batch (exercises aligned-prefix Pallas + plain-JAX tail path).
    batch2 = 4000
    a2 = a[:batch2]
    b2 = b[:batch2]
    out2 = jax.block_until_ready(
        diff_logic_gate_forward(a2, b2, gate_logits, temperature,
                                min_pallas_batch=0))
    ref2 = _reference_forward(a2, b2, gate_logits, temperature)
    assert out2.shape == (batch2,)
    assert jnp.allclose(out2, ref2, atol=1e-5, rtol=1e-5)

    # bf16 inputs streamed in native dtype (upcast in-register), f32 output.
    a_bf = a.astype(jnp.bfloat16)
    b_bf = b.astype(jnp.bfloat16)
    out3 = jax.block_until_ready(
        diff_logic_gate_forward(a_bf, b_bf, gate_logits, temperature,
                                min_pallas_batch=0))
    ref3 = _reference_forward(a_bf, b_bf, gate_logits, temperature)
    assert out3.shape == (batch,) and out3.dtype == jnp.float32
    assert jnp.allclose(out3, ref3, atol=1e-5, rtol=1e-5)

    # Small-batch fast path (no pallas_call) for completeness.
    out4 = jax.block_until_ready(
        diff_logic_gate_forward(a[:100], b[:100], gate_logits, temperature))
    assert jnp.allclose(out4, _reference_forward(a[:100], b[:100], gate_logits,
                                                 temperature),
                        atol=1e-5, rtol=1e-5)

    print("KERNEL_OK")
</pallas_src>

<mosaic_0001>
module attributes {stable_mosaic.version = 11 : i64} {
  func.func @_logic_gate_kernel(%arg0: i32, %arg1: memref<4xf32, #tpu.memory_space<smem>>, %arg2: memref<16x128xf32, #tpu.memory_space<vmem>>, %arg3: memref<16x128xf32, #tpu.memory_space<vmem>>, %arg4: memref<16x128xf32, #tpu.memory_space<vmem>>) attributes {dimension_semantics = [#tpu.dimension_semantics<parallel>], iteration_bounds = array<i64: 2>, scalar_prefetch = 0 : i64, scratch_operands = 0 : i64, tpu.core_type = #tpu.core_type<tc>, window_params = [{transform_indices = @transform_0, window_bounds = array<i64: 4>}, {transform_indices = @transform_1, window_bounds = array<i64: 16, 128>}, {transform_indices = @transform_2, window_bounds = array<i64: 16, 128>}, {transform_indices = @transform_3, window_bounds = array<i64: 16, 128>}]} {
    %c0 = arith.constant 0 : index
    %c0_0 = arith.constant 0 : index
    %0 = vector.load %arg2[%c0, %c0_0] : memref<16x128xf32, #tpu.memory_space<vmem>>, vector<16x128xf32>
    %cst = arith.constant 0.000000e+00 : f32
    %cst_1 = arith.constant 1.000000e+00 : f32
    %1 = vector.broadcast %cst : f32 to vector<16x128xf32>
    %2 = arith.maximumf %1, %0 : vector<16x128xf32>
    %3 = vector.broadcast %cst_1 : f32 to vector<16x128xf32>
    %4 = arith.minimumf %3, %2 : vector<16x128xf32>
    %c0_2 = arith.constant 0 : index
    %c0_3 = arith.constant 0 : index
    %5 = vector.load %arg3[%c0_2, %c0_3] : memref<16x128xf32, #tpu.memory_space<vmem>>, vector<16x128xf32>
    %cst_4 = arith.constant 0.000000e+00 : f32
    %cst_5 = arith.constant 1.000000e+00 : f32
    %6 = vector.broadcast %cst_4 : f32 to vector<16x128xf32>
    %7 = arith.maximumf %6, %5 : vector<16x128xf32>
    %8 = vector.broadcast %cst_5 : f32 to vector<16x128xf32>
    %9 = arith.minimumf %8, %7 : vector<16x128xf32>
    %c0_6 = arith.constant 0 : index
    %10 = memref.load %arg1[%c0_6] : memref<4xf32, #tpu.memory_space<smem>>
    %c1 = arith.constant 1 : index
    %11 = memref.load %arg1[%c1] : memref<4xf32, #tpu.memory_space<smem>>
    %12 = vector.broadcast %11 : f32 to vector<16x128xf32>
    %13 = arith.mulf %12, %4 : vector<16x128xf32>
    %14 = vector.broadcast %10 : f32 to vector<16x128xf32>
    %15 = arith.addf %14, %13 : vector<16x128xf32>
    %c2 = arith.constant 2 : index
    %16 = memref.load %arg1[%c2] : memref<4xf32, #tpu.memory_space<smem>>
    %17 = vector.broadcast %16 : f32 to vector<16x128xf32>
    %18 = arith.mulf %17, %9 : vector<16x128xf32>
    %19 = arith.addf %15, %18 : vector<16x128xf32>
    %c3 = arith.constant 3 : index
    %20 = memref.load %arg1[%c3] : memref<4xf32, #tpu.memory_space<smem>>
    %21 = arith.mulf %4, %9 : vector<16x128xf32>
    %22 = vector.broadcast %20 : f32 to vector<16x128xf32>
    %23 = arith.mulf %22, %21 : vector<16x128xf32>
    %24 = arith.addf %19, %23 : vector<16x128xf32>
    %c0_7 = arith.constant 0 : index
    %c0_8 = arith.constant 0 : index
    %25 = vector.load %arg4[%c0_7, %c0_8] : memref<16x128xf32, #tpu.memory_space<vmem>>, vector<16x128xf32>
    tpu.vector_store %arg4[%c0_7, %c0_8], %24 {strides = array<i32>} : memref<16x128xf32, #tpu.memory_space<vmem>>, vector<16x128xf32>,
    return
  }
  func.func @transform_0(%arg0: i32) -> i32 {
    %c0_i32 = arith.constant 0 : i32
    %c0_i32_0 = arith.constant 0 : i32
    return %c0_i32 : i32
  }
  func.func @transform_1(%arg0: i32) -> (i32, i32) {
    %c0_i32 = arith.constant 0 : i32
    %c0_i32_0 = arith.constant 0 : i32
    return %arg0, %c0_i32 : i32, i32
  }
  func.func @transform_2(%arg0: i32) -> (i32, i32) {
    %c0_i32 = arith.constant 0 : i32
    %c0_i32_0 = arith.constant 0 : i32
    return %arg0, %c0_i32 : i32, i32
  }
  func.func @transform_3(%arg0: i32) -> (i32, i32) {
    %c0_i32 = arith.constant 0 : i32
    %c0_i32_0 = arith.constant 0 : i32
    return %arg0, %c0_i32 : i32, i32
  }
}

</mosaic_0001>

<llo_original>
// kernel: tpu_custom_call.1
$region0: #{tpu_custom_call.1}
  #allocation0 [shape = 'u32[]', space=smem, size = 0x4, offset = 0x4, fixed_abs, tag = 'smem constant byte address 0x4 - core index']
  #allocation1 [shape = 'u32[72,128]{1,0:T(1,128)}', space=vmem, size = 0x9000, scoped, tag = 'internal scratch']
  %s0 = inlined_call_operand.hbm [shape: f32[4], index: 0, kind: input, shape index: {}]
  %s1 = inlined_call_operand.hbm [shape: f32[32,128], index: 1, kind: input, shape index: {}]
  %s2 = inlined_call_operand.hbm [shape: f32[32,128], index: 2, kind: input, shape index: {}]
  %s3 = inlined_call_operand.hbm [shape: f32[32,128], index: 3, kind: output, shape index: {}]
  %s4 = sld [smem:[#allocation0]]
  $region57: #{tpu_custom_call.1} parent=0
    _
  %s6 = ssub.s32 1, %s4
  %s7 = scalar_select 0, %s6, %s4
  $region1: #{tpu_custom_call.1} parent=0
    #allocation2 [shape = 'u8[512]{0}', space=smem, size = 0x200, scoped, tag = 'input window, operand 0, single buffered']
    #allocation3 [shape = 's32[2]{0}', space=sflag, size = 0x8, scoped, tag = 'scoped memory for tpu_custom_call.1']
    #allocation4 [shape = 's32[2]{0}', space=sflag, size = 0x8, scoped, tag = 'scoped memory for tpu_custom_call.1']
    #allocation5 [shape = 's32[2]{0}', space=sflag, size = 0x8, scoped, tag = 'scoped memory for tpu_custom_call.1']
    #allocation6 [shape = 'u8[16384]{0}', space=vmem, size = 0x4000, scoped, tag = 'input window, operand 1']
    #allocation7 [shape = 'u8[16384]{0}', space=vmem, size = 0x4000, scoped, tag = 'input window, operand 2']
    #allocation8 [shape = 's32[2]{0}', space=sflag, size = 0x8, scoped, tag = 'scoped memory for tpu_custom_call.1']
    #allocation9 [shape = 'u8[16384]{0}', space=vmem, size = 0x4000, scoped, tag = 'output window, operand 0']
    %8 = vsyncpa [#allocation5], 0
    %9 = vsyncpa [#allocation3], 0
    %s10 = scalar_lea.sflag [#allocation3], 1
    %11 = vsyncpa %s10, 0
    %12 = vsyncpa [#allocation8], 0
    %s13 = scalar_lea.sflag [#allocation8], 1
    %14 = vsyncpa %s13, 0
    %15 = vsyncpa [#allocation4], 0
    %s16 = scalar_lea.sflag [#allocation4], 1
    %17 = vsyncpa %s16, 0
    loop: start=0, step=1, limit=4
    $region2: #{tpu_custom_call.1} parent=1 // loop_pre_header
      _
    $region3: #{tpu_custom_call.1} parent=1 // loop_header
      %s19 = sphi 0, %s23
      %p20 = scmp.ge.s32.totalorder %s19, 4
      %s27 = sphi 0, %s27
      %s29 = sphi 0, %s27
      %s30 = sphi 0, %s29
      %s44 = sphi 0, %s30
      %s50 = sphi 0, %s52
      %s53 = sphi 0, %s50
      %s54 = sphi 0, %s53
      %s70 = sphi 0, %s54
      %s76 = sphi 0, %s78
      %s79 = sphi 0, %s76
      %s80 = sphi 0, %s79
      %s96 = sphi 0, %s80
      %s102 = sphi 0, %s104
      %s105 = sphi 0, %s102
      %s106 = sphi 0, %s105
      %s122 = sphi 0, %s106
    $region4: #{tpu_custom_call.1} parent=1 // loop_header_branch
      %22 = sbr.rel (%p20) target = $region8
    $region5: #{tpu_custom_call.1} parent=1 // loop_body
      %s24 = ssub.s32 %s19, 1
      %s25 = ssub.s32 %s19, 2
      %s26 = sadd.s32 %s19, 1
      %s28 = sadd.s32 %s27, 1
      %p31 = scmp.eq.s32.totalorder %s19, 1
      %p32 = scmp.ne.s32.totalorder %s27, %s29
      %p33 = scmp.eq.s32.totalorder %s19, 0
      %p34 = por %p32, %p33
      %p35 = scmp.ne.s32.totalorder %s27, %s29
      %p36 = scmp.eq.s32.totalorder %s24, 1
      %p37 = por %p35, %p36
      %p38 = scmp.ne.s32.totalorder %s29, %s30
      %p39 = scmp.eq.s32.totalorder %s24, 0
      %p40 = por %p38, %p39
      %p41 = scmp.ne.s32.totalorder %s29, %s30
      %p42 = scmp.eq.s32.totalorder %s25, 1
      %p43 = por %p41, %p42
      %p45 = scmp.ne.s32.totalorder %s30, %s44
      %p46 = scmp.eq.s32.totalorder %s25, 0
      %p47 = por %p45, %p46
      %s48 = ssub.s32 %s19, %s26
      %p49 = scmp.eq.s32.totalorder %s48, 0
      %s51 = sadd.s32 %s50, 1
      %s52 = scalar_select %p49, %s50, %s51
      %p55 = pneg %p49
      %p56 = scmp.eq.s32.totalorder %s19, 1
      %p57 = por %p55, %p56
      %p58 = scmp.ne.s32.totalorder %s50, %s53
      %p59 = scmp.eq.s32.totalorder %s19, 0
      %p60 = por %p58, %p59
      %p61 = scmp.ne.s32.totalorder %s50, %s53
      %p62 = scmp.eq.s32.totalorder %s24, 1
      %p63 = por %p61, %p62
      %p64 = scmp.ne.s32.totalorder %s53, %s54
      %p65 = scmp.eq.s32.totalorder %s24, 0
      %p66 = por %p64, %p65
      %p67 = scmp.ne.s32.totalorder %s53, %s54
      %p68 = scmp.eq.s32.totalorder %s25, 1
      %p69 = por %p67, %p68
      %p71 = scmp.ne.s32.totalorder %s54, %s70
      %p72 = scmp.eq.s32.totalorder %s25, 0
      %p73 = por %p71, %p72
      %s74 = ssub.s32 %s19, %s26
      %p75 = scmp.eq.s32.totalorder %s74, 0
      %s77 = sadd.s32 %s76, 1
      %s78 = scalar_select %p75, %s76, %s77
      %p81 = pneg %p75
      %p82 = scmp.eq.s32.totalorder %s19, 1
      %p83 = por %p81, %p82
      %p84 = scmp.ne.s32.totalorder %s76, %s79
      %p85 = scmp.eq.s32.totalorder %s19, 0
      %p86 = por %p84, %p85
      %p87 = scmp.ne.s32.totalorder %s76, %s79
      %p88 = scmp.eq.s32.totalorder %s24, 1
      %p89 = por %p87, %p88
      %p90 = scmp.ne.s32.totalorder %s79, %s80
      %p91 = scmp.eq.s32.totalorder %s24, 0
      %p92 = por %p90, %p91
      %p93 = scmp.ne.s32.totalorder %s79, %s80
      %p94 = scmp.eq.s32.totalorder %s25, 1
      %p95 = por %p93, %p94
      %p97 = scmp.ne.s32.totalorder %s80, %s96
      %p98 = scmp.eq.s32.totalorder %s25, 0
      %p99 = por %p97, %p98
      %s100 = ssub.s32 %s19, %s26
      %p101 = scmp.eq.s32.totalorder %s100, 0
      %s103 = sadd.s32 %s102, 1
      %s104 = scalar_select %p101, %s102, %s103
      %p107 = pneg %p101
      %p108 = scmp.eq.s32.totalorder %s19, 1
      %p109 = por %p107, %p108
      %p110 = scmp.ne.s32.totalorder %s102, %s105
      %p111 = scmp.eq.s32.totalorder %s19, 0
      %p112 = por %p110, %p111
      %p113 = scmp.ne.s32.totalorder %s102, %s105
      %p114 = scmp.eq.s32.totalorder %s24, 1
      %p115 = por %p113, %p114
      %p116 = scmp.ne.s32.totalorder %s105, %s106
      %p117 = scmp.eq.s32.totalorder %s24, 0
      %p118 = por %p116, %p117
      %p119 = scmp.ne.s32.totalorder %s105, %s106
      %p120 = scmp.eq.s32.totalorder %s25, 1
      %p121 = por %p119, %p120
      %p123 = scmp.ne.s32.totalorder %s106, %s122
      %p124 = scmp.eq.s32.totalorder %s25, 0
      %p125 = por %p123, %p124
      %p126 = scmp.le.s32.totalorder 1, %s19
      %p127 = scmp.lt.s32.totalorder %s19, 3
      %p128 = pnand %p126, %p127
      %p129 = pneg %p128
      // Predicated region
      $region9: #{tpu_custom_call.1} parent=5 // pred_check
        _
      $region10: #{tpu_custom_call.1} parent=5 // pred_check_branch
        %131 = sbr.rel (%p128) target = $region12
      $region11: #{tpu_custom_call.1} parent=5 // pred_region
        %s132 = ssub.s32 %s19, 1
        // Predicated region
        $region13: #{tpu_custom_call.1} parent=11 // pred_check
          %p133 = pneg %p40
        $region14: #{tpu_custom_call.1} parent=11 // pred_check_branch
          %135 = sbr.rel (%p133) target = $region16
        $region15: #{tpu_custom_call.1} parent=11 // pred_region
          %137 = vsyncadd [#allocation5], 0
          %s139 = sshll.u32 %s0, 4
          %s140 = int_to_ptr.hbm [resolvable:$true] %s139
          %142 = dma.hbm_to_smem %s140, 16, [#allocation2], [#allocation5]
        $region16: #{tpu_custom_call.1} parent=11 // pred_fallthru
          _
      $region12: #{tpu_custom_call.1} parent=5 // pred_fallthru
        _
      %p143 = scmp.lt.s32.totalorder %s19, 2
      // Predicated region
      $region17: #{tpu_custom_call.1} parent=5 // pred_check
        %p144 = pneg %p143
      $region18: #{tpu_custom_call.1} parent=5 // pred_check_branch
        %146 = sbr.rel (%p144) target = $region20
      $region19: #{tpu_custom_call.1} parent=5 // pred_region
        // Predicated region
        $region21: #{tpu_custom_call.1} parent=19 // pred_check
          %p147 = pneg %p60
        $region22: #{tpu_custom_call.1} parent=19 // pred_check_branch
          %149 = sbr.rel (%p147) target = $region24
        $region23: #{tpu_custom_call.1} parent=19 // pred_region
          %s150 = sand.u32 %s50, 1
          %s151 = scalar_lea.sflag [#allocation3], %s150
          %s152 = sand.u32 %s50, 1
          %s153 = smul.addr %s152, 16
          %s154 = scalar_lea.vmem [#allocation6], %s153
          %s155 = smul.u32 2, %s19
          %157 = vsyncadd %s151, 0
          %s158 = smul.addr %s155, 8
          %s159 = scalar_lea.hbm %s1, %s158
          %s160 = sshll.u32 %s159, 4
          %s161 = int_to_ptr.hbm [resolvable:$true] %s160
          %s162 = sshll.u32 %s154, 4
          %s163 = int_to_ptr.vmem [resolvable:$true] %s162
          %168 = dma.hbm_to_vmem [thread:$0]  %s161, 256, %s163, %s151, 128, 128, 8
        $region24: #{tpu_custom_call.1} parent=19 // pred_fallthru
          _
        // Predicated region
        $region25: #{tpu_custom_call.1} parent=19 // pred_check
          %p169 = pneg %p86
        $region26: #{tpu_custom_call.1} parent=19 // pred_check_branch
          %171 = sbr.rel (%p169) target = $region28
        $region27: #{tpu_custom_call.1} parent=19 // pred_region
          %s172 = sand.u32 %s76, 1
          %s173 = scalar_lea.sflag [#allocation8], %s172
          %s174 = sand.u32 %s76, 1
          %s175 = smul.addr %s174, 16
          %s176 = scalar_lea.vmem [#allocation7], %s175
          %s177 = smul.u32 2, %s19
          %179 = vsyncadd %s173, 0
          %s180 = smul.addr %s177, 8
          %s181 = scalar_lea.hbm %s2, %s180
          %s182 = sshll.u32 %s181, 4
          %s183 = int_to_ptr.hbm [resolvable:$true] %s182
          %s184 = sshll.u32 %s176, 4
          %s185 = int_to_ptr.vmem [resolvable:$true] %s184
          %190 = dma.hbm_to_vmem [thread:$0]  %s183, 256, %s185, %s173, 128, 128, 8
        $region28: #{tpu_custom_call.1} parent=19 // pred_fallthru
          _
      $region20: #{tpu_custom_call.1} parent=5 // pred_fallthru
        _
      %p191 = scmp.le.s32.totalorder 1, %s19
      %p192 = scmp.lt.s32.totalorder %s19, 3
      %p193 = pnand %p191, %p192
      %p194 = pneg %p193
      // Predicated region
      $region29: #{tpu_custom_call.1} parent=5 // pred_check
        _
      $region30: #{tpu_custom_call.1} parent=5 // pred_check_branch
        %196 = sbr.rel (%p193) target = $region32
      $region31: #{tpu_custom_call.1} parent=5 // pred_region
        %s197 = ssub.s32 %s19, 1
        // Predicated region
        $region33: #{tpu_custom_call.1} parent=31 // pred_check
          %p198 = pneg %p40
        $region34: #{tpu_custom_call.1} parent=31 // pred_check_branch
          %200 = sbr.rel (%p198) target = $region36
        $region35: #{tpu_custom_call.1} parent=31 // pred_region
          %202 = dma.done [#allocation5], 16
        $region36: #{tpu_custom_call.1} parent=31 // pred_fallthru
          _
        %s203 = sand.u32 %s53, 1
        %s204 = scalar_lea.sflag [#allocation3], %s203
        %s205 = sand.u32 %s53, 1
        %s206 = smul.addr %s205, 16
        %s207 = scalar_lea.vmem [#allocation6], %s206
        // Predicated region
        $region37: #{tpu_custom_call.1} parent=31 // pred_check
          %p208 = pneg %p66
        $region38: #{tpu_custom_call.1} parent=31 // pred_check_branch
          %210 = sbr.rel (%p208) target = $region40
        $region39: #{tpu_custom_call.1} parent=31 // pred_region
          %212 = dma.done %s204, 256
        $region40: #{tpu_custom_call.1} parent=31 // pred_fallthru
          _
        %s213 = sand.u32 %s79, 1
        %s214 = scalar_lea.sflag [#allocation8], %s213
        %s215 = sand.u32 %s79, 1
        %s216 = smul.addr %s215, 16
        %s217 = scalar_lea.vmem [#allocation7], %s216
        // Predicated region
        $region41: #{tpu_custom_call.1} parent=31 // pred_check
          %p218 = pneg %p92
        $region42: #{tpu_custom_call.1} parent=31 // pred_check_branch
          %220 = sbr.rel (%p218) target = $region44
        $region43: #{tpu_custom_call.1} parent=31 // pred_region
          %222 = dma.done %s214, 256
        $region44: #{tpu_custom_call.1} parent=31 // pred_fallthru
          _
        %223 = sfence
        %p224 = pneg %p40
        %p225 = pneg %p37
        %s226 = sand.u32 %s53, 1
        %s227 = scalar_lea.sflag [#allocation3], %s226
        %s228 = sand.u32 %s53, 1
        %s229 = smul.addr %s228, 16
        %s230 = scalar_lea.vmem [#allocation6], %s229
        %p231 = pneg %p66
        %p232 = pneg %p63
        %s233 = sand.u32 %s79, 1
        %s234 = scalar_lea.sflag [#allocation8], %s233
        %s235 = sand.u32 %s79, 1
        %s236 = smul.addr %s235, 16
        %s237 = scalar_lea.vmem [#allocation7], %s236
        %p238 = pneg %p92
        %p239 = pneg %p89
        %p240 = pneg %p118
        %p241 = pneg %p115
        %s242 = sand.u32 %s105, 1
        %s243 = scalar_lea.sflag [#allocation4], %s242
        %s244 = sand.u32 %s105, 1
        %s245 = smul.addr %s244, 16
        %s246 = scalar_lea.vmem [#allocation9], %s245
        %s247 = smul.u32 2, %s24
        %s248 = smul.u32 2, %s24
        %s249 = smul.u32 2, %s24
        %v250 = vld [vmem:[%s207] sm:$0xff]
        %v251 = vld [vmem:[%s207 + $0x8] sm:$0xff]
        %v252 = vmax.f32 %v250, 0.0
        %v253 = vmax.f32 %v251, 0.0
        %v254 = vmin.f32 %v252, 1.0
        %v255 = vmin.f32 %v253, 1.0
        %v256 = vld [vmem:[%s217] sm:$0xff]
        %v257 = vld [vmem:[%s217 + $0x8] sm:$0xff]
        %v258 = vmax.f32 %v256, 0.0
        %v259 = vmax.f32 %v257, 0.0
        %v260 = vmin.f32 %v258, 1.0
        %v261 = vmin.f32 %v259, 1.0
        %s262 = sld [smem:[#allocation2]]
        %s263 = sld [smem:[#allocation2 + $0x1]]
        %v264 = vstv %s263
        %v265 = vmul.f32 %v264, %v254
        %v266 = vmul.f32 %v264, %v255
        %v267 = vstv %s262
        %v268 = vadd.f32 %v267, %v265
        %v269 = vadd.f32 %v267, %v266
        %s270 = sld [smem:[#allocation2 + $0x2]]
        %v271 = vstv %s270
        %v272 = vmul.f32 %v271, %v260
        %v273 = vmul.f32 %v271, %v261
        %v274 = vadd.f32 %v268, %v272
        %v275 = vadd.f32 %v269, %v273
        %s276 = sld [smem:[#allocation2 + $0x3]]
        %v277 = vmul.f32 %v254, %v260
        %v278 = vmul.f32 %v255, %v261
        %v279 = vstv %s276
        %v280 = vmul.f32 %v279, %v277
        %v281 = vmul.f32 %v279, %v278
        %v282 = vadd.f32 %v274, %v280
        %v283 = vadd.f32 %v275, %v281
        %284 = vst [vmem:[%s246] sm:$0xff] %v282
        %285 = vst [vmem:[%s246 + $0x8] sm:$0xff] %v283
        %s286 = sand.u32 %s105, 1
        %s287 = scalar_lea.sflag [#allocation4], %s286
        %s288 = sand.u32 %s105, 1
        %s289 = smul.addr %s288, 16
        %s290 = scalar_lea.vmem [#allocation9], %s289
        // Predicated region
        $region45: #{tpu_custom_call.1} parent=31 // pred_check
          %p291 = pneg %p115
        $region46: #{tpu_custom_call.1} parent=31 // pred_check_branch
          %293 = sbr.rel (%p291) target = $region48
        $region47: #{tpu_custom_call.1} parent=31 // pred_region
          %s294 = smul.u32 2, %s24
          %296 = vsyncadd %s287, 0
          %s297 = smul.addr %s294, 8
          %s298 = scalar_lea.hbm %s3, %s297
          %s299 = sshll.u32 %s290, 4
          %s300 = int_to_ptr.vmem [resolvable:$true] %s299
          %s301 = sshll.u32 %s298, 4
          %s302 = int_to_ptr.hbm [resolvable:$true] %s301
          %307 = dma.vmem_to_hbm [thread:$0]  %s300, 256, %s302, %s287, 128, 128, 8
        $region48: #{tpu_custom_call.1} parent=31 // pred_fallthru
          _
      $region32: #{tpu_custom_call.1} parent=5 // pred_fallthru
        _
      %p308 = scmp.le.s32.totalorder 2, %s19
      // Predicated region
      $region49: #{tpu_custom_call.1} parent=5 // pred_check
        %p309 = pneg %p308
      $region50: #{tpu_custom_call.1} parent=5 // pred_check_branch
        %311 = sbr.rel (%p309) target = $region52
      $region51: #{tpu_custom_call.1} parent=5 // pred_region
        %s312 = ssub.s32 %s19, 2
        // Predicated region
        $region53: #{tpu_custom_call.1} parent=51 // pred_check
          %p313 = pneg %p121
        $region54: #{tpu_custom_call.1} parent=51 // pred_check_branch
          %315 = sbr.rel (%p313) target = $region56
        $region55: #{tpu_custom_call.1} parent=51 // pred_region
          %s316 = sand.u32 %s106, 1
          %s317 = scalar_lea.sflag [#allocation4], %s316
          %s318 = sand.u32 %s106, 1
          %s319 = smul.addr %s318, 16
          %s320 = scalar_lea.vmem [#allocation9], %s319
          %322 = dma.done %s317, 256
        $region56: #{tpu_custom_call.1} parent=51 // pred_fallthru
          _
      $region52: #{tpu_custom_call.1} parent=5 // pred_fallthru
        _
    $region6: #{tpu_custom_call.1} parent=1 // loop_footer
      %s23 = sadd.s32 1, %s19
    $region7: #{tpu_custom_call.1} parent=1 // loop_footer_branch
      %18 = sbr.rel target = $region3
    $region8: #{tpu_custom_call.1} parent=1 // loop_exit
      _
    %323 = vsyncpa [#allocation3], 1
    %s324 = scalar_lea.sflag [#allocation3], 1
    %325 = vsyncpa %s324, 1
    %326 = vsyncpa [#allocation8], 1
    %s327 = scalar_lea.sflag [#allocation8], 1
    %328 = vsyncpa %s327, 1
    %329 = vsyncpa [#allocation4], 1
    %s330 = scalar_lea.sflag [#allocation4], 1
    %331 = vsyncpa %s330, 1
    %332 = vsyncpa [#allocation5], 1
    %s333 = scalar_lea.sflag [#allocation5], 1
    %334 = vsyncpa %s333, 1

</llo_original>
